<compile_context>
chip_gen: v5e
topology: v5e:2x2
jax: 0.10.0
libtpu: 0.0.40
codegen_flags: <defaults>
</compile_context>

<pallas_src>
import functools
import math

import jax
import jax.numpy as jnp
from jax.experimental import pallas as pl
from jax.experimental.pallas import tpu as pltpu


# --------------------------------------------------------------------------
# Generation-aware budgets
# --------------------------------------------------------------------------
def _round_down_multiple(x, m):
    return (x // m) * m


def _round_up_multiple(x, m):
    return -(-x // m) * m


def _query_vmem_capacity_bytes():
    try:
        return int(pltpu.get_tpu_info().vmem_capacity_bytes)
    except Exception:
        return None


_VMEM_CAPACITY_BYTES = _query_vmem_capacity_bytes()

if _VMEM_CAPACITY_BYTES is not None and _VMEM_CAPACITY_BYTES >= 100 * 1024 * 1024:
    # 128 MiB VMEM parts (v5e / v6e, 1 TensorCore per chip): bigger tiles keep
    # more wide shapes on the 2x-traffic single-pass path and amortize the
    # ~0.35 us per-grid-step overhead.
    _TILE_BUDGET_BYTES = 8 * 1024 * 1024
    _VMEM_LIMIT_BYTES = 96 * 1024 * 1024
    _LIKELY_MULTI_CORE = False
else:
    # v7x (64 MiB per TensorCore, 2 TCs per chip) or unknown: stay conservative
    # on VMEM and keep >=2 parallel grid blocks so both TCs get work.
    _TILE_BUDGET_BYTES = 4 * 1024 * 1024
    _VMEM_LIMIT_BYTES = 48 * 1024 * 1024
    _LIKELY_MULTI_CORE = True


def _row_multiple(dtype):
    # Sublane packing: f32 -> 8, bf16 -> 16, int8/fp8 -> 32.
    return 8 * max(1, 4 // jnp.dtype(dtype).itemsize)


def _pick_block_rows(rows, per_row_bytes, row_multiple, min_blocks=1):
    """Largest row block (multiple of `row_multiple`, or == rows) in budget.

    `min_blocks > 1` caps the block so the parallel grid axis has at least
    that many blocks (megacore sharding on multi-TC chips).
    """
    br = max(1, _TILE_BUDGET_BYTES // per_row_bytes)
    br = min(br, rows)
    if min_blocks > 1:
        br = min(br, _round_up_multiple(rows, min_blocks) // min_blocks)
    if rows >= row_multiple:
        br = max(row_multiple, _round_down_multiple(br, row_multiple))
    else:
        br = rows          # == full dim, always a legal block size
    return br


def _compiler_params(dimension_semantics):
    return pltpu.CompilerParams(
        dimension_semantics=dimension_semantics,
        vmem_limit_bytes=_VMEM_LIMIT_BYTES,
    )


# --------------------------------------------------------------------------
# Kernels
# --------------------------------------------------------------------------
def _log_softmax_kernel(x_ref, o_ref, *, axis):
    """Single-pass log-softmax over `axis` of the tile (axis fully resident)."""
    x = x_ref[...].astype(jnp.float32)
    m = jnp.max(x, axis=axis, keepdims=True)
    xm = x - m                                     # computed once, reused
    s = jnp.sum(jnp.exp(xm), axis=axis, keepdims=True)
    o_ref[...] = (xm - jnp.log(s)).astype(o_ref.dtype)


def _lse_kernel(x_ref, lse_ref, m_sc, l_sc, *, total_cols, block_cols, needs_mask):
    """Pass 1 of the large-C path: online logsumexp over column tiles."""
    j = pl.program_id(1)

    @pl.when(j == 0)
    def _():
        m_sc[...] = jnp.full_like(m_sc, -jnp.inf)
        l_sc[...] = jnp.zeros_like(l_sc)

    x = x_ref[...].astype(jnp.float32)

    def update(xv):
        m_prev = m_sc[...]
        m_new = jnp.maximum(m_prev, jnp.max(xv, axis=-1, keepdims=True))
        l_sc[...] = (jnp.exp(m_prev - m_new) * l_sc[...]
                     + jnp.sum(jnp.exp(xv - m_new), axis=-1, keepdims=True))
        m_sc[...] = m_new

    if not needs_mask:
        # cols % block_cols == 0: no OOB columns anywhere, keep the hot path as
        # load -> max -> exp -> sum only (protects the EUP/VALU chain on v7x).
        update(x)
    else:
        last = pl.num_programs(1) - 1

        @pl.when(j < last)
        def _():
            update(x)

        @pl.when(j == last)
        def _():
            # Only the (possibly partial) last column tile needs masking so OOB
            # garbage cannot contaminate the row reduction (exp(-inf) == 0).
            col_ids = j * block_cols + jax.lax.broadcasted_iota(
                jnp.int32, x.shape, 1)
            update(jnp.where(col_ids < total_cols, x, -jnp.inf))

    @pl.when(j == pl.num_programs(1) - 1)
    def _():
        lse_ref[...] = m_sc[...] + jnp.log(l_sc[...])


def _apply_lse_kernel(x_ref, lse_ref, o_ref):
    """Pass 2 of the large-C path: y = x - logsumexp(x)."""
    o_ref[...] = (x_ref[...].astype(jnp.float32) - lse_ref[...]).astype(o_ref.dtype)


# --------------------------------------------------------------------------
# Dispatch paths
# --------------------------------------------------------------------------
def _log_softmax_lastdim_large_c(x2, block_cols=None):
    """Two-pass column-tiled log-softmax for very wide reduction axes."""
    rows, cols = x2.shape
    mult = _row_multiple(x2.dtype)

    br = min(256, rows)
    if rows >= mult:
        br = max(mult, _round_down_multiple(br, mult))
    else:
        br = rows
    if _LIKELY_MULTI_CORE and rows >= 2 * mult:
        # Keep >=2 blocks on the parallel row axis so both v7x TensorCores run.
        br = min(br, max(mult, _round_down_multiple(_round_up_multiple(rows, 2) // 2,
                                                    mult)))
    # TODO(synk): for rows < 2*mult on v7x, split the column sweep across the
    # two TensorCores (per-core partial (m, l) + one logaddexp epilogue).

    if block_cols is None:
        # Budget-derived column tile: keep br*bc*4 ~= tile budget so each pass
        # is a handful of grid steps instead of dozens of tiny DMAs.
        bc = _round_down_multiple(_TILE_BUDGET_BYTES // (br * 4), 128)
        bc = max(128, min(bc, _round_up_multiple(cols, 128)))
    else:
        bc = block_cols
    grid = (pl.cdiv(rows, br), pl.cdiv(cols, bc))
    needs_mask = (cols % bc) != 0

    lse = pl.pallas_call(
        functools.partial(_lse_kernel, total_cols=cols, block_cols=bc,
                          needs_mask=needs_mask),
        out_shape=jax.ShapeDtypeStruct((rows, 1), jnp.float32),
        grid_spec=pltpu.PrefetchScalarGridSpec(
            num_scalar_prefetch=0,
            grid=grid,
            in_specs=[pl.BlockSpec((br, bc), lambda i, j: (i, j))],
            out_specs=pl.BlockSpec((br, 1), lambda i, j: (i, 0)),
            scratch_shapes=[pltpu.VMEM((br, 1), jnp.float32),
                            pltpu.VMEM((br, 1), jnp.float32)],
        ),
        compiler_params=_compiler_params(("parallel", "arbitrary")),
    )(x2)

    # TODO(synk): sweep pipeline_mode=pl.Buffered(3) on the x in_spec below if
    # profiling shows exposed DMA in this pure-streaming pass.
    return pl.pallas_call(
        _apply_lse_kernel,
        out_shape=jax.ShapeDtypeStruct((rows, cols), x2.dtype),
        grid_spec=pltpu.PrefetchScalarGridSpec(
            num_scalar_prefetch=0,
            grid=grid,
            in_specs=[pl.BlockSpec((br, bc), lambda i, j: (i, j)),
                      pl.BlockSpec((br, 1), lambda i, j: (i, 0))],
            out_specs=pl.BlockSpec((br, bc), lambda i, j: (i, j)),
        ),
        compiler_params=_compiler_params(("parallel", "parallel")),
    )(x2, lse)


def _log_softmax_lastdim_2d(x2):
    """Log-softmax over the last axis of a 2-D (rows, cols) slab."""
    rows, cols = x2.shape
    mult = _row_multiple(x2.dtype)
    per_row = cols * 4                       # f32 compute footprint per row
    if min(rows, mult) * per_row > _TILE_BUDGET_BYTES:
        return _log_softmax_lastdim_large_c(x2)

    # On multi-TC chips keep >=2 blocks on the (parallel) row axis.
    min_blocks = 2 if (_LIKELY_MULTI_CORE and rows >= 2 * mult) else 1
    br = _pick_block_rows(rows, per_row, mult, min_blocks=min_blocks)
    return pl.pallas_call(
        functools.partial(_log_softmax_kernel, axis=-1),
        out_shape=jax.ShapeDtypeStruct((rows, cols), x2.dtype),
        grid_spec=pltpu.PrefetchScalarGridSpec(
            num_scalar_prefetch=0,
            grid=(pl.cdiv(rows, br),),        # no jnp.pad / slice round-trip
            in_specs=[pl.BlockSpec((br, cols), lambda i: (i, 0))],
            out_specs=pl.BlockSpec((br, cols), lambda i: (i, 0)),
        ),
        compiler_params=_compiler_params(("parallel",)),
    )(x2)


def _log_softmax_middim_3d(x3):
    """Log-softmax over the middle axis of (B, C, L): sublane reduction."""
    B, C, L = x3.shape
    mult = _row_multiple(x3.dtype)
    # Real VMEM tile pads C (sublane axis) up to the sublane multiple.
    c_pad = _round_up_multiple(C, mult)
    if c_pad * L * 4 <= _TILE_BUDGET_BYTES:
        tl = L                                # == full dim, always legal
    else:
        tl = max(128, _round_down_multiple(_TILE_BUDGET_BYTES // (c_pad * 4), 128))
    bb = max(1, _TILE_BUDGET_BYTES // (c_pad * tl * 4))
    bb = min(bb, B)
    if _LIKELY_MULTI_CORE and B >= 2:
        # Leave >=2 blocks on the leading parallel axis for megacore sharding.
        bb = min(bb, _round_up_multiple(B, 2) // 2)
    grid = (pl.cdiv(B, bb), pl.cdiv(L, tl))
    return pl.pallas_call(
        functools.partial(_log_softmax_kernel, axis=1),
        out_shape=jax.ShapeDtypeStruct((B, C, L), x3.dtype),
        grid_spec=pltpu.PrefetchScalarGridSpec(
            num_scalar_prefetch=0,
            grid=grid,
            in_specs=[pl.BlockSpec((bb, C, tl), lambda i, j: (i, 0, j))],
            out_specs=pl.BlockSpec((bb, C, tl), lambda i, j: (i, 0, j)),
        ),
        compiler_params=_compiler_params(("parallel", "parallel")),
    )(x3)


# --------------------------------------------------------------------------
# Public wrapper
# --------------------------------------------------------------------------
def log_softmax(x, dim=None):
    """JAX/Pallas equivalent of torchact.nn.LogSoftmax(dim)(x)."""
    ndim = x.ndim
    if dim is None:
        dim = 0 if ndim in (0, 1, 3) else 1   # PyTorch legacy softmax dim rule
    if dim < 0:
        dim += ndim

    if ndim == 0:
        return jnp.zeros_like(x)              # log(softmax(scalar)) == 0

    shape = x.shape

    if dim == ndim - 1:
        rows = math.prod(shape[:-1])
        cols = shape[-1]
        out = _log_softmax_lastdim_2d(x.reshape(rows, cols))
        return out.reshape(shape)

    # Inner-dim softmax: keep trailing dims on the lane axis and reduce over
    # the sublane axis -- no transposes, no lane-sparse stores for small C.
    B = math.prod(shape[:dim])
    C = shape[dim]
    L = math.prod(shape[dim + 1:])
    c_pad = _round_up_multiple(C, _row_multiple(x.dtype))
    if c_pad * min(L, 128) * 4 <= _TILE_BUDGET_BYTES:
        out = _log_softmax_middim_3d(x.reshape(B, C, L))
        return out.reshape(shape)

    # Rare fallback: huge softmax axis that is not last -- pay the transpose.
    # TODO(synk): fold this permutation into a BlockSpec index_map instead.
    xt = jnp.moveaxis(x, dim, -1)
    rows = math.prod(xt.shape[:-1])
    out = _log_softmax_lastdim_2d(xt.reshape(rows, C)).reshape(xt.shape)
    return jnp.moveaxis(out, -1, dim)


class LogSoftmax:
    """Mirror of torchact.nn.LogSoftmax (no parameters)."""

    def __init__(self, dim=None):
        self.dim = dim

    def __call__(self, x):
        return log_softmax(x, self.dim)


if __name__ == "__main__":
    key = jax.random.PRNGKey(0)
    k1, k2, k3, k4, k5, k6 = jax.random.split(key, 6)

    def check(y, ref, atol=1e-5, rtol=1e-5):
        assert y.shape == ref.shape and y.dtype == ref.dtype
        assert jnp.allclose(y, ref, atol=atol, rtol=rtol)

    # 1) NCHW input, dim=None -> legacy rule picks dim=1 (channel softmax,
    #    sublane-reduce path, no transposes, lane-dense stores).
    x = jax.random.normal(k1, (2, 4, 16, 16), dtype=jnp.float32)
    y = jax.block_until_ready(LogSoftmax(dim=None)(x))
    check(y, jnp.log(jax.nn.softmax(x, axis=1)))

    # 2) Docstring example: 1-D input, legacy dim=0.
    x1 = jnp.array([1.0, -2.0, 0.0, 3.0], dtype=jnp.float32)
    y1 = jax.block_until_ready(LogSoftmax()(x1))
    check(y1, jnp.log(jax.nn.softmax(x1, axis=0)))

    # 3) Last-dim softmax with a partial last row block (rows % 8 != 0).
    x2 = jax.random.normal(k2, (12, 160), dtype=jnp.float32)
    y2 = jax.block_until_ready(log_softmax(x2, dim=-1))
    check(y2, jnp.log(jax.nn.softmax(x2, axis=-1)))

    # 4) bf16 input, last-dim softmax (f32 compute inside the kernel).
    x3 = jax.random.normal(k3, (8, 256), dtype=jnp.bfloat16)
    y3 = jax.block_until_ready(log_softmax(x3, dim=1))
    ref3 = jnp.log(jax.nn.softmax(x3.astype(jnp.float32), axis=1))
    assert y3.shape == ref3.shape and y3.dtype == jnp.bfloat16
    assert jnp.allclose(y3.astype(jnp.float32), ref3, atol=5e-2, rtol=2e-2)

    # 5) Moderately wide last-dim softmax through the public API (single-pass
    #    single-tile path on all generations given the budgets above).
    x4 = jax.random.normal(k4, (4, 16384), dtype=jnp.float32)
    y4 = jax.block_until_ready(log_softmax(x4, dim=-1))
    check(y4, jnp.log(jax.nn.softmax(x4, axis=-1)), atol=1e-4, rtol=1e-4)

    # 6) Two-pass online-logsumexp path, forced with a small column tile so the
    #    masked partial-column tile and partial row block are exercised.
    x5 = jax.random.normal(k5, (12, 1184), dtype=jnp.float32)
    y5 = jax.block_until_ready(_log_softmax_lastdim_large_c(x5, block_cols=512))
    check(y5, jnp.log(jax.nn.softmax(x5, axis=-1)), atol=1e-4, rtol=1e-4)

    # 7) Two-pass path with cols an exact multiple of the column tile
    #    (unmasked hot path, several online-accumulation steps).
    x6 = jax.random.normal(k6, (16, 1024), dtype=jnp.float32)
    y6 = jax.block_until_ready(_log_softmax_lastdim_large_c(x6, block_cols=256))
    check(y6, jnp.log(jax.nn.softmax(x6, axis=-1)), atol=1e-4, rtol=1e-4)

    print("KERNEL_OK")
</pallas_src>

<mosaic_0001>
module attributes {stable_mosaic.version = 11 : i64} {
  func.func @_log_softmax_kernel(%arg0: i32, %arg1: i32, %arg2: memref<1x4x256xf32, #tpu.memory_space<vmem>>, %arg3: memref<1x4x256xf32, #tpu.memory_space<vmem>>) attributes {dimension_semantics = [#tpu.dimension_semantics<parallel>, #tpu.dimension_semantics<parallel>], iteration_bounds = array<i64: 2, 1>, scalar_prefetch = 0 : i64, scratch_operands = 0 : i64, tpu.core_type = #tpu.core_type<tc>, window_params = [{transform_indices = @transform_0, window_bounds = array<i64: 1, 4, 256>}, {transform_indices = @transform_1, window_bounds = array<i64: 1, 4, 256>}]} {
    %c0 = arith.constant 0 : index
    %c0_0 = arith.constant 0 : index
    %c0_1 = arith.constant 0 : index
    %0 = vector.load %arg2[%c0, %c0_0, %c0_1] : memref<1x4x256xf32, #tpu.memory_space<vmem>>, vector<1x4x256xf32>
    %cst = arith.constant dense<0xFF800000> : vector<1x256xf32>
    %1 = vector.multi_reduction <maximumf>, %0, %cst [1] : vector<1x4x256xf32> to vector<1x256xf32>
    %2 = vector.shape_cast %1 : vector<1x256xf32> to vector<1x1x256xf32>
    %3 = vector.broadcast %2 : vector<1x1x256xf32> to vector<1x4x256xf32>
    %4 = arith.subf %0, %3 : vector<1x4x256xf32>
    %5 = math.exp %4 : vector<1x4x256xf32>
    %cst_2 = arith.constant dense<0.000000e+00> : vector<1x256xf32>
    %6 = vector.multi_reduction <add>, %5, %cst_2 [1] : vector<1x4x256xf32> to vector<1x256xf32>
    %7 = vector.shape_cast %6 : vector<1x256xf32> to vector<1x1x256xf32>
    %8 = math.log %7 : vector<1x1x256xf32>
    %9 = vector.broadcast %8 : vector<1x1x256xf32> to vector<1x4x256xf32>
    %10 = arith.subf %4, %9 : vector<1x4x256xf32>
    %c0_3 = arith.constant 0 : index
    %c0_4 = arith.constant 0 : index
    %c0_5 = arith.constant 0 : index
    %11 = vector.load %arg3[%c0_3, %c0_4, %c0_5] : memref<1x4x256xf32, #tpu.memory_space<vmem>>, vector<1x4x256xf32>
    tpu.vector_store %arg3[%c0_3, %c0_4, %c0_5], %10 {strides = array<i32>} : memref<1x4x256xf32, #tpu.memory_space<vmem>>, vector<1x4x256xf32>,
    return
  }
  func.func @transform_0(%arg0: i32, %arg1: i32) -> (i32, i32, i32) {
    %c0_i32 = arith.constant 0 : i32
    %c0_i32_0 = arith.constant 0 : i32
    return %arg0, %c0_i32, %arg1 : i32, i32, i32
  }
  func.func @transform_1(%arg0: i32, %arg1: i32) -> (i32, i32, i32) {
    %c0_i32 = arith.constant 0 : i32
    %c0_i32_0 = arith.constant 0 : i32
    return %arg0, %c0_i32, %arg1 : i32, i32, i32
  }
}

</mosaic_0001>

<llo_original>
// kernel: tpu_custom_call.1
$region0: #{tpu_custom_call.1}
  #allocation0 [shape = 'u32[]', space=smem, size = 0x4, offset = 0x4, fixed_abs, tag = 'smem constant byte address 0x4 - core index']
  #allocation1 [shape = 'u32[72,128]{1,0:T(1,128)}', space=vmem, size = 0x9000, scoped, tag = 'internal scratch']
  %s0 = inlined_call_operand.hbm [shape: f32[2,4,256], index: 0, kind: input, shape index: {}]
  %s1 = inlined_call_operand.hbm [shape: f32[2,4,256], index: 1, kind: output, shape index: {}]
  %s2 = sld [smem:[#allocation0]]
  $region41: #{tpu_custom_call.1} parent=0
    _
  %s4 = ssub.s32 1, %s2
  %s5 = scalar_select 0, %s4, %s2
  $region1: #{tpu_custom_call.1} parent=0
    #allocation2 [shape = 'u8[8192]{0}', space=vmem, size = 0x2000, scoped, tag = 'input window, operand 0']
    #allocation3 [shape = 's32[2]{0}', space=sflag, size = 0x8, scoped, tag = 'scoped memory for tpu_custom_call.1']
    #allocation4 [shape = 's32[2]{0}', space=sflag, size = 0x8, scoped, tag = 'scoped memory for tpu_custom_call.1']
    #allocation5 [shape = 'u8[8192]{0}', space=vmem, size = 0x2000, scoped, tag = 'output window, operand 0']
    %6 = vsyncpa [#allocation3], 0
    %s7 = scalar_lea.sflag [#allocation3], 1
    %8 = vsyncpa %s7, 0
    %9 = vsyncpa [#allocation4], 0
    %s10 = scalar_lea.sflag [#allocation4], 1
    %11 = vsyncpa %s10, 0
    loop: start=0, step=1, limit=4
    $region2: #{tpu_custom_call.1} parent=1 // loop_pre_header
      _
    $region3: #{tpu_custom_call.1} parent=1 // loop_header
      %s13 = sphi 0, %s17
      %p14 = scmp.ge.s32.totalorder %s13, 4
      %s20 = sphi 0, %s32
      %s21 = sphi 0, %s28
      %s22 = sphi 0, %s20
      %s23 = sphi 0, %s21
      %s24 = sphi 0, %s22
      %s25 = sphi 0, %s23
      %s37 = sphi 0, %s39
      %s40 = sphi 0, %s37
      %s41 = sphi 0, %s40
      %s57 = sphi 0, %s41
      %s65 = sphi 0, %s67
      %s68 = sphi 0, %s65
      %s69 = sphi 0, %s68
      %s85 = sphi 0, %s69
    $region4: #{tpu_custom_call.1} parent=1 // loop_header_branch
      %16 = sbr.rel (%p14) target = $region8
    $region5: #{tpu_custom_call.1} parent=1 // loop_body
      %s18 = ssub.s32 %s13, 1
      %s19 = ssub.s32 %s13, 2
      %s26 = sadd.s32 1, %s21
      %p27 = scmp.ge.s32.totalorder %s26, 1
      %s28 = scalar_select %p27, 0, %s26
      %s29 = sadd.s32 1, %s20
      %s30 = scalar_select %p27, %s29, %s20
      %p31 = scmp.ge.s32.totalorder %s30, 2
      %s32 = scalar_select %p31, 0, %s30
      %s33 = ssub.s32 %s20, %s32
      %s34 = ssub.s32 %s21, %s28
      %s35 = sor.u32 %s33, %s34
      %p36 = scmp.eq.s32.totalorder %s35, 0
      %s38 = sadd.s32 %s37, 1
      %s39 = scalar_select %p36, %s37, %s38
      %p42 = pneg %p36
      %p43 = scmp.eq.s32.totalorder %s13, 1
      %p44 = por %p42, %p43
      %p45 = scmp.ne.s32.totalorder %s37, %s40
      %p46 = scmp.eq.s32.totalorder %s13, 0
      %p47 = por %p45, %p46
      %p48 = scmp.ne.s32.totalorder %s37, %s40
      %p49 = scmp.eq.s32.totalorder %s18, 1
      %p50 = por %p48, %p49
      %p51 = scmp.ne.s32.totalorder %s40, %s41
      %p52 = scmp.eq.s32.totalorder %s18, 0
      %p53 = por %p51, %p52
      %p54 = scmp.ne.s32.totalorder %s40, %s41
      %p55 = scmp.eq.s32.totalorder %s19, 1
      %p56 = por %p54, %p55
      %p58 = scmp.ne.s32.totalorder %s41, %s57
      %p59 = scmp.eq.s32.totalorder %s19, 0
      %p60 = por %p58, %p59
      %s61 = ssub.s32 %s20, %s32
      %s62 = ssub.s32 %s21, %s28
      %s63 = sor.u32 %s61, %s62
      %p64 = scmp.eq.s32.totalorder %s63, 0
      %s66 = sadd.s32 %s65, 1
      %s67 = scalar_select %p64, %s65, %s66
      %p70 = pneg %p64
      %p71 = scmp.eq.s32.totalorder %s13, 1
      %p72 = por %p70, %p71
      %p73 = scmp.ne.s32.totalorder %s65, %s68
      %p74 = scmp.eq.s32.totalorder %s13, 0
      %p75 = por %p73, %p74
      %p76 = scmp.ne.s32.totalorder %s65, %s68
      %p77 = scmp.eq.s32.totalorder %s18, 1
      %p78 = por %p76, %p77
      %p79 = scmp.ne.s32.totalorder %s68, %s69
      %p80 = scmp.eq.s32.totalorder %s18, 0
      %p81 = por %p79, %p80
      %p82 = scmp.ne.s32.totalorder %s68, %s69
      %p83 = scmp.eq.s32.totalorder %s19, 1
      %p84 = por %p82, %p83
      %p86 = scmp.ne.s32.totalorder %s69, %s85
      %p87 = scmp.eq.s32.totalorder %s19, 0
      %p88 = por %p86, %p87
      %p89 = scmp.le.s32.totalorder 1, %s13
      %p90 = scmp.lt.s32.totalorder %s13, 3
      %p91 = pnand %p89, %p90
      %p92 = pneg %p91
      // Predicated region
      $region9: #{tpu_custom_call.1} parent=5 // pred_check
        _
      $region10: #{tpu_custom_call.1} parent=5 // pred_check_branch
        %94 = sbr.rel (%p91) target = $region12
      $region11: #{tpu_custom_call.1} parent=5 // pred_region
        %s95 = ssub.s32 %s13, 1
      $region12: #{tpu_custom_call.1} parent=5 // pred_fallthru
        _
      %p96 = scmp.lt.s32.totalorder %s13, 2
      // Predicated region
      $region13: #{tpu_custom_call.1} parent=5 // pred_check
        %p97 = pneg %p96
      $region14: #{tpu_custom_call.1} parent=5 // pred_check_branch
        %99 = sbr.rel (%p97) target = $region16
      $region15: #{tpu_custom_call.1} parent=5 // pred_region
        // Predicated region
        $region17: #{tpu_custom_call.1} parent=15 // pred_check
          %p100 = pneg %p47
        $region18: #{tpu_custom_call.1} parent=15 // pred_check_branch
          %102 = sbr.rel (%p100) target = $region20
        $region19: #{tpu_custom_call.1} parent=15 // pred_region
          %s103 = sand.u32 %s37, 1
          %s104 = scalar_lea.sflag [#allocation3], %s103
          %s105 = sand.u32 %s37, 1
          %s106 = smul.addr %s105, 8
          %s107 = scalar_lea.vmem [#allocation2], %s106
          %s108 = smul.u32 2, %s21
          %110 = vsyncadd %s104, 0
          %s111 = smul.addr %s20, 2
          %s112 = sadd.s32 %s108, %s111
          %s113 = smul.addr %s112, 4
          %s114 = scalar_lea.hbm %s0, %s113
          %s116 = sshll.u32 %s114, 4
          %s117 = int_to_ptr.hbm [resolvable:$true] %s116
          %s118 = sshll.u32 %s107, 4
          %s119 = int_to_ptr.vmem [resolvable:$true] %s118
          %121 = dma.hbm_to_vmem [thread:$0]  %s117, 128, %s119, %s104
        $region20: #{tpu_custom_call.1} parent=15 // pred_fallthru
          _
      $region16: #{tpu_custom_call.1} parent=5 // pred_fallthru
        _
      %p122 = scmp.le.s32.totalorder 1, %s13
      %p123 = scmp.lt.s32.totalorder %s13, 3
      %p124 = pnand %p122, %p123
      %p125 = pneg %p124
      // Predicated region
      $region21: #{tpu_custom_call.1} parent=5 // pred_check
        _
      $region22: #{tpu_custom_call.1} parent=5 // pred_check_branch
        %127 = sbr.rel (%p124) target = $region24
      $region23: #{tpu_custom_call.1} parent=5 // pred_region
        %s128 = ssub.s32 %s13, 1
        %s129 = sand.u32 %s40, 1
        %s130 = scalar_lea.sflag [#allocation3], %s129
        %s131 = sand.u32 %s40, 1
        %s132 = smul.addr %s131, 8
        %s133 = scalar_lea.vmem [#allocation2], %s132
        // Predicated region
        $region25: #{tpu_custom_call.1} parent=23 // pred_check
          %p134 = pneg %p53
        $region26: #{tpu_custom_call.1} parent=23 // pred_check_branch
          %136 = sbr.rel (%p134) target = $region28
        $region27: #{tpu_custom_call.1} parent=23 // pred_region
          %138 = dma.done %s130, 128
        $region28: #{tpu_custom_call.1} parent=23 // pred_fallthru
          _
        %s139 = sand.u32 %s40, 1
        %s140 = scalar_lea.sflag [#allocation3], %s139
        %s141 = sand.u32 %s40, 1
        %s142 = smul.addr %s141, 8
        %s143 = scalar_lea.vmem [#allocation2], %s142
        %p144 = pneg %p53
        %p145 = pneg %p50
        %p146 = pneg %p81
        %p147 = pneg %p78
        %s148 = sand.u32 %s68, 1
        %s149 = scalar_lea.sflag [#allocation4], %s148
        %s150 = sand.u32 %s68, 1
        %s151 = smul.addr %s150, 8
        %s152 = scalar_lea.vmem [#allocation5], %s151
        %s153 = smul.u32 2, %s23
        %s154 = smul.u32 2, %s23
        %v155 = vld [vmem:[%s133] sm:$0xff]
        %157 = vst [vmem:[#allocation1] ss:$2 sm:$0xff] %v155
        %v158 = vld.sshfl [vmem:[#allocation1] sm:$0xff pattern:$0x75316420]
        %v159 = vld.sshfl [vmem:[#allocation1 + $0x8] sm:$0xff pattern:$0x75316420]
        %vm162 = vcmask 1043456
        %v163 = vsel %vm162, %v158, -inf
        %v164 = vrot.slane %v163, 4
        %v165 = vmax.f32 %v163, %v164
        %v166 = vrot.slane %v165, 2
        %v167 = vmax.f32 %v165, %v166
        %v168 = vrot.slane %v167, 1
        %v169 = vmax.f32 %v167, %v168
        %v170 = vsel %vm162, %v159, -inf
        %v171 = vrot.slane %v170, 4
        %v172 = vmax.f32 %v170, %v171
        %v173 = vrot.slane %v172, 2
        %v174 = vmax.f32 %v172, %v173
        %v175 = vrot.slane %v174, 1
        %v176 = vmax.f32 %v174, %v175
        %v179 = vrot.slane %v176, 4
        %v180 = vsel %vm162, %v169, %v179
        %v182 = vsub.f32 %v155, %v180
        %v183 = vmul.f32 %v182, 1.442695
        %v184 = vpow.pop %v183
        %186 = vst [vmem:[#allocation1] ss:$2 sm:$0xff] %v184
        %v187 = vld.sshfl [vmem:[#allocation1] sm:$0xff pattern:$0x75316420]
        %v188 = vld.sshfl [vmem:[#allocation1 + $0x8] sm:$0xff pattern:$0x75316420]
        %v191 = vsel %vm162, %v187, 0.0
        %v192 = vrot.slane %v191, 4
        %v193 = vadd.f32 %v191, %v192
        %v194 = vrot.slane %v193, 2
        %v195 = vadd.f32 %v193, %v194
        %v196 = vrot.slane %v195, 1
        %v197 = vadd.f32 %v195, %v196
        %v198 = vsel %vm162, %v188, 0.0
        %v199 = vrot.slane %v198, 4
        %v200 = vadd.f32 %v198, %v199
        %v201 = vrot.slane %v200, 2
        %v202 = vadd.f32 %v200, %v201
        %v203 = vrot.slane %v202, 1
        %v204 = vadd.f32 %v202, %v203
        %v205 = vlog2.pop %v197
        %v206 = vmul.f32 %v205, 0.6931472
        %v207 = vlog2.pop %v204
        %v208 = vmul.f32 %v207, 0.6931472
        %v211 = vrot.slane %v208, 4
        %v212 = vsel %vm162, %v206, %v211
        %v214 = vsub.f32 %v182, %v212
        %215 = vst [vmem:[%s152] sm:$0xff] %v214
        %s216 = sand.u32 %s68, 1
        %s217 = scalar_lea.sflag [#allocation4], %s216
        %s218 = sand.u32 %s68, 1
        %s219 = smul.addr %s218, 8
        %s220 = scalar_lea.vmem [#allocation5], %s219
        // Predicated region
        $region29: #{tpu_custom_call.1} parent=23 // pred_check
          %p221 = pneg %p78
        $region30: #{tpu_custom_call.1} parent=23 // pred_check_branch
          %223 = sbr.rel (%p221) target = $region32
        $region31: #{tpu_custom_call.1} parent=23 // pred_region
          %s224 = smul.u32 2, %s23
          %226 = vsyncadd %s217, 0
          %s227 = smul.addr %s22, 2
          %s228 = sadd.s32 %s224, %s227
          %s229 = smul.addr %s228, 4
          %s230 = scalar_lea.hbm %s1, %s229
          %s232 = sshll.u32 %s220, 4
          %s233 = int_to_ptr.vmem [resolvable:$true] %s232
          %s234 = sshll.u32 %s230, 4
          %s235 = int_to_ptr.hbm [resolvable:$true] %s234
          %237 = dma.vmem_to_hbm [thread:$0]  %s233, 128, %s235, %s217
        $region32: #{tpu_custom_call.1} parent=23 // pred_fallthru
          _
      $region24: #{tpu_custom_call.1} parent=5 // pred_fallthru
        _
      %p238 = scmp.le.s32.totalorder 2, %s13
      // Predicated region
      $region33: #{tpu_custom_call.1} parent=5 // pred_check
        %p239 = pneg %p238
      $region34: #{tpu_custom_call.1} parent=5 // pred_check_branch
        %241 = sbr.rel (%p239) target = $region36
      $region35: #{tpu_custom_call.1} parent=5 // pred_region
        %s242 = ssub.s32 %s13, 2
        // Predicated region
        $region37: #{tpu_custom_call.1} parent=35 // pred_check
          %p243 = pneg %p84
        $region38: #{tpu_custom_call.1} parent=35 // pred_check_branch
          %245 = sbr.rel (%p243) target = $region40
        $region39: #{tpu_custom_call.1} parent=35 // pred_region
          %s246 = sand.u32 %s69, 1
          %s247 = scalar_lea.sflag [#allocation4], %s246
          %s248 = sand.u32 %s69, 1
          %s249 = smul.addr %s248, 8
          %s250 = scalar_lea.vmem [#allocation5], %s249
          %252 = dma.done %s247, 128
        $region40: #{tpu_custom_call.1} parent=35 // pred_fallthru
          _
      $region36: #{tpu_custom_call.1} parent=5 // pred_fallthru
        _
    $region6: #{tpu_custom_call.1} parent=1 // loop_footer
      %s17 = sadd.s32 1, %s13
    $region7: #{tpu_custom_call.1} parent=1 // loop_footer_branch
      %12 = sbr.rel target = $region3
    $region8: #{tpu_custom_call.1} parent=1 // loop_exit
      _
    %253 = vsyncpa [#allocation3], 1
    %s254 = scalar_lea.sflag [#allocation3], 1
    %255 = vsyncpa %s254, 1
    %256 = vsyncpa [#allocation4], 1
    %s257 = scalar_lea.sflag [#allocation4], 1
    %258 = vsyncpa %s257, 1

</llo_original>
